<compile_context>
chip_gen: v5e
topology: v5e:2x2
jax: 0.10.0
libtpu: 0.0.40
codegen_flags: <defaults>
</compile_context>

<pallas_src>
import jax
import jax.numpy as jnp
from jax.experimental import pallas as pl
from jax.experimental.pallas import tpu as pltpu


# Single-tile budget (one copy of one input tile).  Double-buffered in + out is
# ~4x this, i.e. <= ~24 MiB, comfortably inside the 32 MiB scoped-VMEM limit we
# request below on every generation (v5e default is 16 MiB, so we raise it).
_MAX_TILE_BYTES = 6 * 1024 * 1024
_VMEM_LIMIT_BYTES = 32 * 1024 * 1024


def _largest_aligned_divisor(dim: int, align: int, max_elems: int):
    """Largest t with dim % t == 0, t % align == 0 and t <= max_elems, else None."""
    best = None
    t = align
    limit = min(dim, max_elems)
    while t <= limit:
        if dim % t == 0:
            best = t
        t += align
    return best


def _select_tiles(B: int, C: int, HW: int, itemsize: int, max_tile_bytes: int):
    """Pick (T_b, T_c, T_hw).  Prefers full-extent contiguous tiles, falls back
    to 128-multiple sub-tiles under a per-tile VMEM budget."""
    max_elems = max(1, max_tile_bytes // itemsize)

    if C * HW <= max_elems:
        # Whole (C, HW) slab per batch element: fully contiguous reads & writes.
        T_c, T_hw = C, HW
    else:
        # Keep full C (contiguous output writeback), sub-tile HW on a
        # 128-multiple divisor.
        t_hw = _largest_aligned_divisor(HW, 128, max_elems // max(C, 1))
        if t_hw is not None:
            T_c, T_hw = C, t_hw
        else:
            # HW has no suitable 128-multiple divisor (e.g. 196, 3136) or C alone
            # is too big: keep full HW (legal: full-extent last dim) and sub-tile C.
            t_c = _largest_aligned_divisor(C, 128, max_elems // max(HW, 1))
            if t_c is not None:
                T_c, T_hw = t_c, HW
            else:
                # Last resort (pathological non-divisible huge dims): best-effort
                # 128-multiple sub-tiles; may exceed the soft budget but stays
                # correct and within the explicit 32 MiB vmem limit in practice.
                T_c = _largest_aligned_divisor(C, 128, max_elems) or C
                T_hw = _largest_aligned_divisor(HW, 128, max(1, max_elems // T_c)) or HW

    # Batch several elements per grid step to amortize per-step overhead.
    per_b = T_c * T_hw
    T_b = 1
    for cand in (8, 4, 2):
        if B % cand == 0 and cand * per_b <= max_elems:
            T_b = cand
            break
    return T_b, T_c, T_hw


def _transpose_tile_kernel(x_ref, o_ref):
    # x_ref: (T_b, T_c, T_hw) tile of the (B, C, HW) input
    # o_ref: (T_b, T_hw, T_c) tile of the (B, HW, C) output
    # Batched minor-dim transpose on the XLU; lane-dense stores when T_c % 128 == 0
    # or T_c == C (full extent).
    o_ref[...] = jnp.swapaxes(x_ref[...], 1, 2)


def rearrange_b_c_h_w__to__b_hw_c(x: jax.Array, *, max_tile_bytes: int = _MAX_TILE_BYTES) -> jax.Array:
    """einops.rearrange(x, 'b c h w -> b (h w) c') as a Pallas TPU kernel."""
    B, C, H, W = x.shape
    HW = H * W

    # Contiguous NCHW -> NC(HW) flatten is a free view in HBM.
    x2 = x.reshape(B, C, HW)

    # Small-shape dispatch: tiny C / HW would produce lane-masked stores and
    # few-byte DMA rows (documented worst case); XLA fuses the permute for free.
    if C < 128 or HW < 128:
        return jnp.transpose(x2, (0, 2, 1))

    itemsize = jnp.dtype(x.dtype).itemsize
    T_b, T_c, T_hw = _select_tiles(B, C, HW, itemsize, max_tile_bytes)

    n_b, n_c, n_hw = B // T_b, C // T_c, HW // T_hw

    # Order grid axes by descending trip count so the leading parallel axis is
    # never size-1 (keeps both v7x TensorCores busy regardless of which axis
    # carries the work).
    trips = {"b": n_b, "hw": n_hw, "c": n_c}
    order = sorted(trips, key=lambda k: -trips[k])
    pos = {k: i for i, k in enumerate(order)}
    grid = tuple(trips[k] for k in order)

    def in_map(*g):
        return (g[pos["b"]], g[pos["c"]], g[pos["hw"]])

    def out_map(*g):
        return (g[pos["b"]], g[pos["hw"]], g[pos["c"]])

    return pl.pallas_call(
        _transpose_tile_kernel,
        out_shape=jax.ShapeDtypeStruct((B, HW, C), x.dtype),
        grid_spec=pl.GridSpec(
            grid=grid,
            in_specs=[pl.BlockSpec((T_b, T_c, T_hw), in_map)],
            out_specs=pl.BlockSpec((T_b, T_hw, T_c), out_map),
        ),
        compiler_params=pltpu.CompilerParams(
            # Pure permute, no reduction: every axis is parallel (megacore friendly).
            dimension_semantics=("parallel",) * len(grid),
            vmem_limit_bytes=_VMEM_LIMIT_BYTES,
        ),
        # Zero-FLOP, purely memory-bound custom call: help XLA schedule around it.
        cost_estimate=pl.CostEstimate(
            flops=0, transcendentals=0, bytes_accessed=2 * x.nbytes
        ),
    )(x2)


class Rearrange:
    """JAX/Pallas mirror of the PyTorch Rearrange module for the
    'b c h w -> b (h w) c' pattern."""

    def __init__(self, from_shape: str, to_shape: str, **kwargs):
        self.from_shape = from_shape
        self.to_shape = to_shape
        self.kwargs = kwargs
        pattern = from_shape + " -> " + to_shape
        if pattern != "b c h w -> b (h w) c":
            # TODO(synk): general einops pattern parsing not implemented; only the
            # common 'b c h w -> b (h w) c' hot path is lowered to Pallas.
            raise NotImplementedError(pattern)

    def __call__(self, x):
        return rearrange_b_c_h_w__to__b_hw_c(x)


def _reference(x):
    B, C, H, W = x.shape
    return jnp.transpose(x.reshape(B, C, H * W), (0, 2, 1))


if __name__ == "__main__":
    mod = Rearrange("b c h w", "b (h w) c")

    # 1) Module-spec small shape (C=4 < 128 -> small-shape XLA dispatch).
    x = jax.random.normal(jax.random.PRNGKey(0), (2, 4, 16, 16), dtype=jnp.float32)
    y = jax.block_until_ready(mod(x))
    assert y.shape == (2, 256, 4) and y.dtype == x.dtype
    assert jnp.array_equal(y, _reference(x)), "mismatch (small-shape dispatch)"

    # 2) Pallas path, full-extent tiles, batched over B (single grid step).
    x1 = jax.random.normal(jax.random.PRNGKey(1), (2, 128, 16, 16), dtype=jnp.float32)
    y1 = jax.block_until_ready(mod(x1))
    assert y1.shape == (2, 256, 128)
    assert jnp.array_equal(y1, _reference(x1)), "mismatch (Pallas full-extent path)"

    # 3) Pallas path, forced HW sub-tiling (full-C contiguous writes), multi-step grid.
    x2 = jax.random.normal(jax.random.PRNGKey(2), (2, 256, 16, 16), dtype=jnp.float32)
    y2 = jax.block_until_ready(
        rearrange_b_c_h_w__to__b_hw_c(x2, max_tile_bytes=128 * 1024)
    )
    assert jnp.array_equal(y2, _reference(x2)), "mismatch (Pallas HW-subtile path)"

    # 4) Pallas path, non-128-divisible HW (full-extent HW) with C sub-tiling.
    x3 = jax.random.normal(jax.random.PRNGKey(3), (1, 256, 12, 12), dtype=jnp.float32)
    y3 = jax.block_until_ready(
        rearrange_b_c_h_w__to__b_hw_c(x3, max_tile_bytes=128 * 1024)
    )
    assert jnp.array_equal(y3, _reference(x3)), "mismatch (Pallas C-subtile path)"

    print("KERNEL_OK")
</pallas_src>

<mosaic_0001>
module attributes {stable_mosaic.version = 11 : i64} {
  func.func @_transpose_tile_kernel(%arg0: i32, %arg1: i32, %arg2: i32, %arg3: memref<2x128x256xf32, #tpu.memory_space<vmem>>, %arg4: memref<2x256x128xf32, #tpu.memory_space<vmem>>) attributes {dimension_semantics = [#tpu.dimension_semantics<parallel>, #tpu.dimension_semantics<parallel>, #tpu.dimension_semantics<parallel>], iteration_bounds = array<i64: 1, 1, 1>, scalar_prefetch = 0 : i64, scratch_operands = 0 : i64, tpu.core_type = #tpu.core_type<tc>, window_params = [{transform_indices = @transform_0, window_bounds = array<i64: 2, 128, 256>}, {transform_indices = @transform_1, window_bounds = array<i64: 2, 256, 128>}]} {
    %c0 = arith.constant 0 : index
    %c0_0 = arith.constant 0 : index
    %c0_1 = arith.constant 0 : index
    %0 = vector.load %arg3[%c0, %c0_0, %c0_1] : memref<2x128x256xf32, #tpu.memory_space<vmem>>, vector<2x128x256xf32>
    %1 = tpu.transpose %0, [0, 2, 1] : vector<2x128x256xf32> -> vector<2x256x128xf32>
    %c0_2 = arith.constant 0 : index
    %c0_3 = arith.constant 0 : index
    %c0_4 = arith.constant 0 : index
    %2 = vector.load %arg4[%c0_2, %c0_3, %c0_4] : memref<2x256x128xf32, #tpu.memory_space<vmem>>, vector<2x256x128xf32>
    tpu.vector_store %arg4[%c0_2, %c0_3, %c0_4], %1 {strides = array<i32>} : memref<2x256x128xf32, #tpu.memory_space<vmem>>, vector<2x256x128xf32>,
    return
  }
  func.func @transform_0(%arg0: i32, %arg1: i32, %arg2: i32) -> (i32, i32, i32) {
    %c0_i32 = arith.constant 0 : i32
    return %arg0, %arg2, %arg1 : i32, i32, i32
  }
  func.func @transform_1(%arg0: i32, %arg1: i32, %arg2: i32) -> (i32, i32, i32) {
    %c0_i32 = arith.constant 0 : i32
    return %arg0, %arg1, %arg2 : i32, i32, i32
  }
}

</mosaic_0001>

<llo_original>
// kernel: tpu_custom_call.1
$region0: #{tpu_custom_call.1}
  #allocation0 [shape = 'u32[]', space=smem, size = 0x4, offset = 0x4, fixed_abs, tag = 'smem constant byte address 0x4 - core index']
  #allocation1 [shape = 'u32[72,128]{1,0:T(1,128)}', space=vmem, size = 0x9000, scoped, tag = 'internal scratch']
  %s0 = inlined_call_operand.hbm [shape: f32[2,128,256], index: 0, kind: input, shape index: {}]
  %s1 = inlined_call_operand.hbm [shape: f32[2,256,128], index: 1, kind: output, shape index: {}]
  %s2 = sld [smem:[#allocation0]]
  $region18: #{tpu_custom_call.1} parent=0
    _
  %s4 = ssub.s32 1, %s2
  %s5 = scalar_select 0, %s4, %s2
  $region1: #{tpu_custom_call.1} parent=0
    #allocation2 [shape = 'u8[262144]{0}', space=vmem, size = 0x40000, scoped, tag = 'input window, operand 0, single buffered']
    #allocation3 [shape = 's32[1]{0}', space=sflag, size = 0x4, scoped, tag = 'scoped memory for tpu_custom_call.1']
    #allocation4 [shape = 's32[1]{0}', space=sflag, size = 0x4, scoped, tag = 'scoped memory for tpu_custom_call.1']
    #allocation5 [shape = 'u8[262144]{0}', space=vmem, size = 0x40000, scoped, tag = 'output window, operand 0, single buffered']
    %6 = vsyncpa [#allocation3], 0
    %7 = vsyncpa [#allocation4], 0
    // Predicated region
    $region2: #{tpu_custom_call.1} parent=1 // pred_check
      _
    $region3: #{tpu_custom_call.1} parent=1 // pred_check_branch
      %9 = sbr.rel (0) target = $region5
    $region4: #{tpu_custom_call.1} parent=1 // pred_region
      %11 = vsyncadd [#allocation3], 0
      %s12 = sshll.u32 %s0, 4
      %s13 = int_to_ptr.hbm [resolvable:$true] %s12
      %s14 = sshll.u32 [#allocation2], 4
      %s15 = int_to_ptr.vmem [resolvable:$true] %s14
      %20 = dma.hbm_to_vmem [thread:$0]  %s13, 8192, %s15, [#allocation3], 256, 256, 16
    $region5: #{tpu_custom_call.1} parent=1 // pred_fallthru
      _
    // Predicated region
    $region6: #{tpu_custom_call.1} parent=1 // pred_check
      _
    $region7: #{tpu_custom_call.1} parent=1 // pred_check_branch
      %22 = sbr.rel (0) target = $region9
    $region8: #{tpu_custom_call.1} parent=1 // pred_region
      %24 = dma.done [#allocation3], 8192
    $region9: #{tpu_custom_call.1} parent=1 // pred_fallthru
      _
    %v25 = vld [vmem:[#allocation2] sm:$0xff]
    %v26 = vld [vmem:[#allocation2 + $0x8] sm:$0xff]
    %v27 = vld [vmem:[#allocation2 + $0x10] sm:$0xff]
    %v28 = vld [vmem:[#allocation2 + $0x18] sm:$0xff]
    %v29 = vld [vmem:[#allocation2 + $0x20] sm:$0xff]
    %v30 = vld [vmem:[#allocation2 + $0x28] sm:$0xff]
    %v31 = vld [vmem:[#allocation2 + $0x30] sm:$0xff]
    %v32 = vld [vmem:[#allocation2 + $0x38] sm:$0xff]
    %v33 = vld [vmem:[#allocation2 + $0x40] sm:$0xff]
    %v34 = vld [vmem:[#allocation2 + $0x48] sm:$0xff]
    %v35 = vld [vmem:[#allocation2 + $0x50] sm:$0xff]
    %v36 = vld [vmem:[#allocation2 + $0x58] sm:$0xff]
    %v37 = vld [vmem:[#allocation2 + $0x60] sm:$0xff]
    %v38 = vld [vmem:[#allocation2 + $0x68] sm:$0xff]
    %v39 = vld [vmem:[#allocation2 + $0x70] sm:$0xff]
    %v40 = vld [vmem:[#allocation2 + $0x78] sm:$0xff]
    %v41 = vld [vmem:[#allocation2 + $0x80] sm:$0xff]
    %v42 = vld [vmem:[#allocation2 + $0x88] sm:$0xff]
    %v43 = vld [vmem:[#allocation2 + $0x90] sm:$0xff]
    %v44 = vld [vmem:[#allocation2 + $0x98] sm:$0xff]
    %v45 = vld [vmem:[#allocation2 + $0xa0] sm:$0xff]
    %v46 = vld [vmem:[#allocation2 + $0xa8] sm:$0xff]
    %v47 = vld [vmem:[#allocation2 + $0xb0] sm:$0xff]
    %v48 = vld [vmem:[#allocation2 + $0xb8] sm:$0xff]
    %v49 = vld [vmem:[#allocation2 + $0xc0] sm:$0xff]
    %v50 = vld [vmem:[#allocation2 + $0xc8] sm:$0xff]
    %v51 = vld [vmem:[#allocation2 + $0xd0] sm:$0xff]
    %v52 = vld [vmem:[#allocation2 + $0xd8] sm:$0xff]
    %v53 = vld [vmem:[#allocation2 + $0xe0] sm:$0xff]
    %v54 = vld [vmem:[#allocation2 + $0xe8] sm:$0xff]
    %v55 = vld [vmem:[#allocation2 + $0xf0] sm:$0xff]
    %v56 = vld [vmem:[#allocation2 + $0xf8] sm:$0xff]
    %v57 = vld [vmem:[#allocation2 + $0x100] sm:$0xff]
    %v58 = vld [vmem:[#allocation2 + $0x108] sm:$0xff]
    %v59 = vld [vmem:[#allocation2 + $0x110] sm:$0xff]
    %v60 = vld [vmem:[#allocation2 + $0x118] sm:$0xff]
    %v61 = vld [vmem:[#allocation2 + $0x120] sm:$0xff]
    %v62 = vld [vmem:[#allocation2 + $0x128] sm:$0xff]
    %v63 = vld [vmem:[#allocation2 + $0x130] sm:$0xff]
    %v64 = vld [vmem:[#allocation2 + $0x138] sm:$0xff]
    %v65 = vld [vmem:[#allocation2 + $0x140] sm:$0xff]
    %v66 = vld [vmem:[#allocation2 + $0x148] sm:$0xff]
    %v67 = vld [vmem:[#allocation2 + $0x150] sm:$0xff]
    %v68 = vld [vmem:[#allocation2 + $0x158] sm:$0xff]
    %v69 = vld [vmem:[#allocation2 + $0x160] sm:$0xff]
    %v70 = vld [vmem:[#allocation2 + $0x168] sm:$0xff]
    %v71 = vld [vmem:[#allocation2 + $0x170] sm:$0xff]
    %v72 = vld [vmem:[#allocation2 + $0x178] sm:$0xff]
    %v73 = vld [vmem:[#allocation2 + $0x180] sm:$0xff]
    %v74 = vld [vmem:[#allocation2 + $0x188] sm:$0xff]
    %v75 = vld [vmem:[#allocation2 + $0x190] sm:$0xff]
    %v76 = vld [vmem:[#allocation2 + $0x198] sm:$0xff]
    %v77 = vld [vmem:[#allocation2 + $0x1a0] sm:$0xff]
    %v78 = vld [vmem:[#allocation2 + $0x1a8] sm:$0xff]
    %v79 = vld [vmem:[#allocation2 + $0x1b0] sm:$0xff]
    %v80 = vld [vmem:[#allocation2 + $0x1b8] sm:$0xff]
    %v81 = vld [vmem:[#allocation2 + $0x1c0] sm:$0xff]
    %v82 = vld [vmem:[#allocation2 + $0x1c8] sm:$0xff]
    %v83 = vld [vmem:[#allocation2 + $0x1d0] sm:$0xff]
    %v84 = vld [vmem:[#allocation2 + $0x1d8] sm:$0xff]
    %v85 = vld [vmem:[#allocation2 + $0x1e0] sm:$0xff]
    %v86 = vld [vmem:[#allocation2 + $0x1e8] sm:$0xff]
    %v87 = vld [vmem:[#allocation2 + $0x1f0] sm:$0xff]
    %v88 = vld [vmem:[#allocation2 + $0x1f8] sm:$0xff]
    %89 = vxpose.xlu0.b32.start [1/16] %v25, 128
    %90 = vxpose.xlu0.b32.cont [2/16] %v27, 128
    %91 = vxpose.xlu0.b32.cont [3/16] %v29, 128
    %92 = vxpose.xlu0.b32.cont [4/16] %v31, 128
    %93 = vxpose.xlu0.b32.cont [5/16] %v33, 128
    %94 = vxpose.xlu0.b32.cont [6/16] %v35, 128
    %95 = vxpose.xlu0.b32.cont [7/16] %v37, 128
    %96 = vxpose.xlu0.b32.cont [8/16] %v39, 128
    %97 = vxpose.xlu0.b32.cont [9/16] %v41, 128
    %98 = vxpose.xlu0.b32.cont [10/16] %v43, 128
    %99 = vxpose.xlu0.b32.cont [11/16] %v45, 128
    %100 = vxpose.xlu0.b32.cont [12/16] %v47, 128
    %101 = vxpose.xlu0.b32.cont [13/16] %v49, 128
    %102 = vxpose.xlu0.b32.cont [14/16] %v51, 128
    %103 = vxpose.xlu0.b32.cont [15/16] %v53, 128
    %104 = vxpose.xlu0.b32.end [16/16] %v55, 128
    %v105 = vpop.trf.xlu0
    %v106 = vpop.trf.xlu0
    %v107 = vpop.trf.xlu0
    %v108 = vpop.trf.xlu0
    %v109 = vpop.trf.xlu0
    %v110 = vpop.trf.xlu0
    %v111 = vpop.trf.xlu0
    %v112 = vpop.trf.xlu0
    %v113 = vpop.trf.xlu0
    %v114 = vpop.trf.xlu0
    %v115 = vpop.trf.xlu0
    %v116 = vpop.trf.xlu0
    %v117 = vpop.trf.xlu0
    %v118 = vpop.trf.xlu0
    %v119 = vpop.trf.xlu0
    %v120 = vpop.trf.xlu0
    %121 = vxpose.xlu0.b32.start [1/16] %v26, 128
    %122 = vxpose.xlu0.b32.cont [2/16] %v28, 128
    %123 = vxpose.xlu0.b32.cont [3/16] %v30, 128
    %124 = vxpose.xlu0.b32.cont [4/16] %v32, 128
    %125 = vxpose.xlu0.b32.cont [5/16] %v34, 128
    %126 = vxpose.xlu0.b32.cont [6/16] %v36, 128
    %127 = vxpose.xlu0.b32.cont [7/16] %v38, 128
    %128 = vxpose.xlu0.b32.cont [8/16] %v40, 128
    %129 = vxpose.xlu0.b32.cont [9/16] %v42, 128
    %130 = vxpose.xlu0.b32.cont [10/16] %v44, 128
    %131 = vxpose.xlu0.b32.cont [11/16] %v46, 128
    %132 = vxpose.xlu0.b32.cont [12/16] %v48, 128
    %133 = vxpose.xlu0.b32.cont [13/16] %v50, 128
    %134 = vxpose.xlu0.b32.cont [14/16] %v52, 128
    %135 = vxpose.xlu0.b32.cont [15/16] %v54, 128
    %136 = vxpose.xlu0.b32.end [16/16] %v56, 128
    %v137 = vpop.trf.xlu0
    %v138 = vpop.trf.xlu0
    %v139 = vpop.trf.xlu0
    %v140 = vpop.trf.xlu0
    %v141 = vpop.trf.xlu0
    %v142 = vpop.trf.xlu0
    %v143 = vpop.trf.xlu0
    %v144 = vpop.trf.xlu0
    %v145 = vpop.trf.xlu0
    %v146 = vpop.trf.xlu0
    %v147 = vpop.trf.xlu0
    %v148 = vpop.trf.xlu0
    %v149 = vpop.trf.xlu0
    %v150 = vpop.trf.xlu0
    %v151 = vpop.trf.xlu0
    %v152 = vpop.trf.xlu0
    %153 = vxpose.xlu0.b32.start [1/16] %v57, 128
    %154 = vxpose.xlu0.b32.cont [2/16] %v59, 128
    %155 = vxpose.xlu0.b32.cont [3/16] %v61, 128
    %156 = vxpose.xlu0.b32.cont [4/16] %v63, 128
    %157 = vxpose.xlu0.b32.cont [5/16] %v65, 128
    %158 = vxpose.xlu0.b32.cont [6/16] %v67, 128
    %159 = vxpose.xlu0.b32.cont [7/16] %v69, 128
    %160 = vxpose.xlu0.b32.cont [8/16] %v71, 128
    %161 = vxpose.xlu0.b32.cont [9/16] %v73, 128
    %162 = vxpose.xlu0.b32.cont [10/16] %v75, 128
    %163 = vxpose.xlu0.b32.cont [11/16] %v77, 128
    %164 = vxpose.xlu0.b32.cont [12/16] %v79, 128
    %165 = vxpose.xlu0.b32.cont [13/16] %v81, 128
    %166 = vxpose.xlu0.b32.cont [14/16] %v83, 128
    %167 = vxpose.xlu0.b32.cont [15/16] %v85, 128
    %168 = vxpose.xlu0.b32.end [16/16] %v87, 128
    %v169 = vpop.trf.xlu0
    %v170 = vpop.trf.xlu0
    %v171 = vpop.trf.xlu0
    %v172 = vpop.trf.xlu0
    %v173 = vpop.trf.xlu0
    %v174 = vpop.trf.xlu0
    %v175 = vpop.trf.xlu0
    %v176 = vpop.trf.xlu0
    %v177 = vpop.trf.xlu0
    %v178 = vpop.trf.xlu0
    %v179 = vpop.trf.xlu0
    %v180 = vpop.trf.xlu0
    %v181 = vpop.trf.xlu0
    %v182 = vpop.trf.xlu0
    %v183 = vpop.trf.xlu0
    %v184 = vpop.trf.xlu0
    %185 = vxpose.xlu0.b32.start [1/16] %v58, 128
    %186 = vxpose.xlu0.b32.cont [2/16] %v60, 128
    %187 = vxpose.xlu0.b32.cont [3/16] %v62, 128
    %188 = vxpose.xlu0.b32.cont [4/16] %v64, 128
    %189 = vxpose.xlu0.b32.cont [5/16] %v66, 128
    %190 = vxpose.xlu0.b32.cont [6/16] %v68, 128
    %191 = vxpose.xlu0.b32.cont [7/16] %v70, 128
    %192 = vxpose.xlu0.b32.cont [8/16] %v72, 128
    %193 = vxpose.xlu0.b32.cont [9/16] %v74, 128
    %194 = vxpose.xlu0.b32.cont [10/16] %v76, 128
    %195 = vxpose.xlu0.b32.cont [11/16] %v78, 128
    %196 = vxpose.xlu0.b32.cont [12/16] %v80, 128
    %197 = vxpose.xlu0.b32.cont [13/16] %v82, 128
    %198 = vxpose.xlu0.b32.cont [14/16] %v84, 128
    %199 = vxpose.xlu0.b32.cont [15/16] %v86, 128
    %200 = vxpose.xlu0.b32.end [16/16] %v88, 128
    %v201 = vpop.trf.xlu0
    %v202 = vpop.trf.xlu0
    %v203 = vpop.trf.xlu0
    %v204 = vpop.trf.xlu0
    %v205 = vpop.trf.xlu0
    %v206 = vpop.trf.xlu0
    %v207 = vpop.trf.xlu0
    %v208 = vpop.trf.xlu0
    %v209 = vpop.trf.xlu0
    %v210 = vpop.trf.xlu0
    %v211 = vpop.trf.xlu0
    %v212 = vpop.trf.xlu0
    %v213 = vpop.trf.xlu0
    %v214 = vpop.trf.xlu0
    %v215 = vpop.trf.xlu0
    %v216 = vpop.trf.xlu0
    %217 = vst [vmem:[#allocation5] sm:$0xff] %v105
    %218 = vst [vmem:[#allocation5 + $0x8] sm:$0xff] %v106
    %219 = vst [vmem:[#allocation5 + $0x10] sm:$0xff] %v107
    %220 = vst [vmem:[#allocation5 + $0x18] sm:$0xff] %v108
    %221 = vst [vmem:[#allocation5 + $0x20] sm:$0xff] %v109
    %222 = vst [vmem:[#allocation5 + $0x28] sm:$0xff] %v110
    %223 = vst [vmem:[#allocation5 + $0x30] sm:$0xff] %v111
    %224 = vst [vmem:[#allocation5 + $0x38] sm:$0xff] %v112
    %225 = vst [vmem:[#allocation5 + $0x40] sm:$0xff] %v113
    %226 = vst [vmem:[#allocation5 + $0x48] sm:$0xff] %v114
    %227 = vst [vmem:[#allocation5 + $0x50] sm:$0xff] %v115
    %228 = vst [vmem:[#allocation5 + $0x58] sm:$0xff] %v116
    %229 = vst [vmem:[#allocation5 + $0x60] sm:$0xff] %v117
    %230 = vst [vmem:[#allocation5 + $0x68] sm:$0xff] %v118
    %231 = vst [vmem:[#allocation5 + $0x70] sm:$0xff] %v119
    %232 = vst [vmem:[#allocation5 + $0x78] sm:$0xff] %v120
    %233 = vst [vmem:[#allocation5 + $0x80] sm:$0xff] %v137
    %234 = vst [vmem:[#allocation5 + $0x88] sm:$0xff] %v138
    %235 = vst [vmem:[#allocation5 + $0x90] sm:$0xff] %v139
    %236 = vst [vmem:[#allocation5 + $0x98] sm:$0xff] %v140
    %237 = vst [vmem:[#allocation5 + $0xa0] sm:$0xff] %v141
    %238 = vst [vmem:[#allocation5 + $0xa8] sm:$0xff] %v142
    %239 = vst [vmem:[#allocation5 + $0xb0] sm:$0xff] %v143
    %240 = vst [vmem:[#allocation5 + $0xb8] sm:$0xff] %v144
    %241 = vst [vmem:[#allocation5 + $0xc0] sm:$0xff] %v145
    %242 = vst [vmem:[#allocation5 + $0xc8] sm:$0xff] %v146
    %243 = vst [vmem:[#allocation5 + $0xd0] sm:$0xff] %v147
    %244 = vst [vmem:[#allocation5 + $0xd8] sm:$0xff] %v148
    %245 = vst [vmem:[#allocation5 + $0xe0] sm:$0xff] %v149
    %246 = vst [vmem:[#allocation5 + $0xe8] sm:$0xff] %v150
    %247 = vst [vmem:[#allocation5 + $0xf0] sm:$0xff] %v151
    %248 = vst [vmem:[#allocation5 + $0xf8] sm:$0xff] %v152
    %249 = vst [vmem:[#allocation5 + $0x100] sm:$0xff] %v169
    %250 = vst [vmem:[#allocation5 + $0x108] sm:$0xff] %v170
    %251 = vst [vmem:[#allocation5 + $0x110] sm:$0xff] %v171
    %252 = vst [vmem:[#allocation5 + $0x118] sm:$0xff] %v172
    %253 = vst [vmem:[#allocation5 + $0x120] sm:$0xff] %v173
    %254 = vst [vmem:[#allocation5 + $0x128] sm:$0xff] %v174
    %255 = vst [vmem:[#allocation5 + $0x130] sm:$0xff] %v175
    %256 = vst [vmem:[#allocation5 + $0x138] sm:$0xff] %v176
    %257 = vst [vmem:[#allocation5 + $0x140] sm:$0xff] %v177
    %258 = vst [vmem:[#allocation5 + $0x148] sm:$0xff] %v178
    %259 = vst [vmem:[#allocation5 + $0x150] sm:$0xff] %v179
    %260 = vst [vmem:[#allocation5 + $0x158] sm:$0xff] %v180
    %261 = vst [vmem:[#allocation5 + $0x160] sm:$0xff] %v181
    %262 = vst [vmem:[#allocation5 + $0x168] sm:$0xff] %v182
    %263 = vst [vmem:[#allocation5 + $0x170] sm:$0xff] %v183
    %264 = vst [vmem:[#allocation5 + $0x178] sm:$0xff] %v184
    %265 = vst [vmem:[#allocation5 + $0x180] sm:$0xff] %v201
    %266 = vst [vmem:[#allocation5 + $0x188] sm:$0xff] %v202
    %267 = vst [vmem:[#allocation5 + $0x190] sm:$0xff] %v203
    %268 = vst [vmem:[#allocation5 + $0x198] sm:$0xff] %v204
    %269 = vst [vmem:[#allocation5 + $0x1a0] sm:$0xff] %v205
    %270 = vst [vmem:[#allocation5 + $0x1a8] sm:$0xff] %v206
    %271 = vst [vmem:[#allocation5 + $0x1b0] sm:$0xff] %v207
    %272 = vst [vmem:[#allocation5 + $0x1b8] sm:$0xff] %v208
    %273 = vst [vmem:[#allocation5 + $0x1c0] sm:$0xff] %v209
    %274 = vst [vmem:[#allocation5 + $0x1c8] sm:$0xff] %v210
    %275 = vst [vmem:[#allocation5 + $0x1d0] sm:$0xff] %v211
    %276 = vst [vmem:[#allocation5 + $0x1d8] sm:$0xff] %v212
    %277 = vst [vmem:[#allocation5 + $0x1e0] sm:$0xff] %v213
    %278 = vst [vmem:[#allocation5 + $0x1e8] sm:$0xff] %v214
    %279 = vst [vmem:[#allocation5 + $0x1f0] sm:$0xff] %v215
    %280 = vst [vmem:[#allocation5 + $0x1f8] sm:$0xff] %v216
    // Predicated region
    $region10: #{tpu_custom_call.1} parent=1 // pred_check
      _
    $region11: #{tpu_custom_call.1} parent=1 // pred_check_branch
      %282 = sbr.rel (0) target = $region13
    $region12: #{tpu_custom_call.1} parent=1 // pred_region
      %284 = vsyncadd [#allocation4], 0
      %s285 = sshll.u32 [#allocation5], 4
      %s286 = int_to_ptr.vmem [resolvable:$true] %s285
      %s287 = sshll.u32 %s1, 4
      %s288 = int_to_ptr.hbm [resolvable:$true] %s287
      %293 = dma.vmem_to_hbm [thread:$0]  %s286, 8192, %s288, [#allocation4], 128, 128, 8
    $region13: #{tpu_custom_call.1} parent=1 // pred_fallthru
      _
    // Predicated region
    $region14: #{tpu_custom_call.1} parent=1 // pred_check
      _
    $region15: #{tpu_custom_call.1} parent=1 // pred_check_branch
      %295 = sbr.rel (0) target = $region17
    $region16: #{tpu_custom_call.1} parent=1 // pred_region
      %297 = dma.done [#allocation4], 8192
    $region17: #{tpu_custom_call.1} parent=1 // pred_fallthru
      _
    %298 = vsyncpa [#allocation3], 1
    %299 = vsyncpa [#allocation4], 1

</llo_original>
